<compile_context>
chip_gen: v7x
topology: tpu7x:2x2x1
jax: 0.10.0
libtpu: 0.0.40
codegen_flags: <defaults>
</compile_context>

<pallas_src>
import jax
import jax.numpy as jnp
import numpy as np
from jax.experimental import pallas as pl
from jax.experimental.pallas import tpu as pltpu


def jitter_kernel(code_ref, x_ref, o_ref):
    """One grid step = one (batch, channel-tile).

    code_ref : (1, 1, To) int32  -- jitter code per output step, values {0,1,2}
    x_ref    : (1, Ct, T) float  -- channel tile of one batch item, T = To + 2
    o_ref    : (1, Ct, To) float
    """
    to = o_ref.shape[2]

    # Code broadcasts over the channel (sublane) axis; masks hoisted once per tile.
    code = code_ref[0]                      # (1, To)
    m_prev = code == 0                      # take previous sample
    m_next = code == 2                      # take next sample

    xb = x_ref[0]                           # (Ct, T) resident VMEM tile
    x_prev = xb[:, 0:to]
    x_same = xb[:, 1:to + 1]
    x_next = xb[:, 2:to + 2]
    # If a bundle dump ever shows the offset-1/2 lane slices materializing
    # tile-sized VMEM copies, switch x_same/x_next to
    # pltpu.roll(xb, shift=-1/-2, axis=-1)[:, :to] to push the shift onto the XLU.

    # Two-level VPU select; direct full-tile store, no temporaries.
    o_ref[0] = jnp.where(m_prev, x_prev, jnp.where(m_next, x_next, x_same))


def _sublane_multiple(dtype):
    # Packed-sublane granularity: 8 for 4-byte, 16 for bf16, 32 for 1-byte dtypes.
    return max(8, 32 // jnp.dtype(dtype).itemsize)


def _pick_channel_tile(C, T, itemsize, sub_mult, target_bytes):
    """Largest channel tile whose input buffer is <= target_bytes (~1-4 MiB sweet
    spot; default 2 MiB also respects v5e's 16 MiB default scoped VMEM once
    double-buffered in+out buffers are accounted for)."""
    if C <= sub_mult or C * T * itemsize <= target_bytes:
        return C                                    # whole-C block (must equal C or be a multiple of sub_mult)
    cap = target_bytes // (T * itemsize)
    if cap >= C:
        return C
    ct = max(sub_mult, (cap // sub_mult) * sub_mult)
    # Prefer a divisor of C (no ragged final block); otherwise Pallas masks the tail.
    for cand in range(ct, sub_mult - 1, -sub_mult):
        if C % cand == 0:
            return cand
    return ct


def jitter_forward(x, mindex, *, target_tile_bytes=2 * 1024 * 1024):
    """x: (B, C, T) float, mindex: (B, T) int (module state).

    Returns (B, C, T-2), matching the PyTorch forward for any mindex produced
    by Jitter (values constrained to {t-1, t, t+1}).  dtype is preserved
    (bf16 inputs stay bf16 end-to-end -> half the HBM traffic).
    """
    B, C, T = x.shape
    To = T - 2
    itemsize = jnp.dtype(x.dtype).itemsize

    # Precompute the per-step jitter code in the wrapper (mindex is CPU-built
    # module state anyway): code[b, t] = mindex[b, t+1] - t in {0, 1, 2}.
    code = (mindex[:, 1:-1].astype(jnp.int32)
            - jnp.arange(To, dtype=jnp.int32)[None, :]).reshape(B, 1, To)

    ct = _pick_channel_tile(C, T, itemsize, _sublane_multiple(x.dtype),
                            target_tile_bytes)
    nc = pl.cdiv(C, ct)

    # Explicit VMEM budget: double-buffered input + output tiles + code, with
    # headroom for Mosaic internal scratch.  Stays well under v7x's 64 MiB
    # physical and v5e's 16 MiB default scoped limit at the default target.
    tile_bytes = ct * T * itemsize + ct * To * itemsize
    vmem_need = 2 * tile_bytes + 2 * To * 4
    vmem_limit = int(min(max(vmem_need + (8 << 20), 16 << 20), 48 << 20))

    # TODO(synk): add time-axis tiling with a 2-element halo (pl.Element offsets
    # or manual make_async_copy from an ANY-space x) for extremely long windows
    # where even an 8-channel x T slab exceeds the per-buffer budget.

    return pl.pallas_call(
        jitter_kernel,
        out_shape=jax.ShapeDtypeStruct((B, C, To), x.dtype),
        grid_spec=pltpu.PrefetchScalarGridSpec(
            num_scalar_prefetch=0,
            grid=(B, nc),
            in_specs=[
                pl.BlockSpec((1, 1, To), lambda b, c: (b, 0, 0)),
                pl.BlockSpec((1, ct, T), lambda b, c: (b, c, 0)),
            ],
            out_specs=pl.BlockSpec((1, ct, To), lambda b, c: (b, c, 0)),
        ),
        compiler_params=pltpu.CompilerParams(
            dimension_semantics=("parallel", "parallel"),  # shard across TCs (v7x megacore)
            vmem_limit_bytes=vmem_limit),
    )(code, x)


def build_mindex(seed, n_batch, n_win, replace_prob):
    """Replicates Jitter.__init__ mask construction (sequential 2nd-order Markov
    chain, host-side module state -- exactly like the PyTorch module which
    samples it eagerly on CPU).  No Pallas equivalent needed: it is state, not
    part of the forward compute."""
    rng = np.random.default_rng(seed)
    p, s = replace_prob, 1.0 - 2.0 * replace_prob
    tmp = np.tile(np.array([p, s, p], dtype=np.float64), (3, 3, 1))
    tmp[2][1] = np.array([0.0, s / (p + s), p / (p + s)], dtype=np.float64)

    T = n_win + 2
    codes = np.ones((n_batch, T), dtype=np.int64)
    for b in range(n_batch):
        for t in range(2, n_win + 1):
            # cond2d[codes[t-2]][codes[t-1]] == Categorical(tmp[codes[t-1]][codes[t-2]])
            probs = tmp[codes[b, t - 1], codes[b, t - 2]]
            codes[b, t] = rng.choice(3, p=probs)
        codes[b, n_win + 1] = 1
    adjust = np.arange(T, dtype=np.int64) - 1
    return jnp.asarray(codes + adjust[None, :], dtype=jnp.int32)


def _reference(x, mindex):
    # Pure-JAX mirror of the PyTorch forward (index_select + [:, :, 1:-1]).
    return jnp.take_along_axis(x, mindex[:, None, :].astype(jnp.int32), axis=2)[:, :, 1:-1]


if __name__ == "__main__":
    key = jax.random.PRNGKey(0)
    k1, k2 = jax.random.split(key)

    # --- Test 1: shapes consistent with the module (B=2, C=16, n_win=16, p=0.1). ---
    B, C, n_win, p = 2, 16, 16, 0.1
    T = n_win + 2
    x = jax.random.normal(k1, (B, C, T), dtype=jnp.float32)
    mindex = build_mindex(0, B, n_win, p)

    out = jax.block_until_ready(jitter_forward(x, mindex))
    ref = _reference(x, mindex)
    assert out.shape == (B, C, n_win)
    assert jnp.array_equal(out, ref)

    # --- Test 2: exercise the channel-tiled path with a lane-dense window (bf16). ---
    B2, C2, n_win2 = 2, 32, 256
    T2 = n_win2 + 2
    x2 = jax.random.normal(k2, (B2, C2, T2), dtype=jnp.bfloat16)
    mindex2 = build_mindex(1, B2, n_win2, p)

    # Small per-buffer target forces ct < C -> grid=(B, C//ct), multiple pipeline steps.
    out2 = jax.block_until_ready(
        jitter_forward(x2, mindex2, target_tile_bytes=8 * 1024))
    ref2 = _reference(x2, mindex2)
    assert out2.shape == (B2, C2, n_win2)
    assert jnp.array_equal(out2, ref2)

    print("KERNEL_OK")
</pallas_src>

<mosaic_0001>
module attributes {stable_mosaic.version = 11 : i64} {
  func.func @jitter_kernel(%arg0: i32, %arg1: i32, %arg2: memref<1x1x16xi32, #tpu.memory_space<vmem>>, %arg3: memref<1x16x18xf32, #tpu.memory_space<vmem>>, %arg4: memref<1x16x16xf32, #tpu.memory_space<vmem>>) attributes {dimension_semantics = [#tpu.dimension_semantics<parallel>, #tpu.dimension_semantics<parallel>], iteration_bounds = array<i64: 2, 1>, scalar_prefetch = 0 : i64, scratch_operands = 0 : i64, tpu.core_type = #tpu.core_type<tc>, window_params = [{transform_indices = @transform_0, window_bounds = array<i64: 1, 1, 16>}, {transform_indices = @transform_1, window_bounds = array<i64: 1, 16, 18>}, {transform_indices = @transform_2, window_bounds = array<i64: 1, 16, 16>}]} {
    %c0 = arith.constant 0 : index
    %c0_0 = arith.constant 0 : index
    %c0_1 = arith.constant 0 : index
    %0 = vector.load %arg2[%c0, %c0_0, %c0_1] : memref<1x1x16xi32, #tpu.memory_space<vmem>>, vector<1x1x16xi32>
    %1 = vector.shape_cast %0 : vector<1x1x16xi32> to vector<1x16xi32>
    %c0_i32 = arith.constant 0 : i32
    %2 = vector.broadcast %c0_i32 : i32 to vector<1x16xi32>
    %3 = arith.cmpi eq, %1, %2 : vector<1x16xi32>
    %c2_i32 = arith.constant 2 : i32
    %4 = vector.broadcast %c2_i32 : i32 to vector<1x16xi32>
    %5 = arith.cmpi eq, %1, %4 : vector<1x16xi32>
    %c0_2 = arith.constant 0 : index
    %c0_3 = arith.constant 0 : index
    %c0_4 = arith.constant 0 : index
    %6 = vector.load %arg3[%c0_2, %c0_3, %c0_4] : memref<1x16x18xf32, #tpu.memory_space<vmem>>, vector<1x16x18xf32>
    %7 = vector.shape_cast %6 : vector<1x16x18xf32> to vector<16x18xf32>
    %8 = vector.extract_strided_slice %7 {offsets = [0, 0], sizes = [16, 16], strides = [1, 1]} : vector<16x18xf32> to vector<16x16xf32>
    %9 = vector.extract_strided_slice %7 {offsets = [0, 1], sizes = [16, 16], strides = [1, 1]} : vector<16x18xf32> to vector<16x16xf32>
    %10 = vector.extract_strided_slice %7 {offsets = [0, 2], sizes = [16, 16], strides = [1, 1]} : vector<16x18xf32> to vector<16x16xf32>
    %11 = vector.shape_cast %5 : vector<1x16xi1> to vector<1x16xi1>
    %12 = vector.broadcast %11 : vector<1x16xi1> to vector<16x16xi1>
    %13 = arith.select %12, %10, %9 : vector<16x16xi1>, vector<16x16xf32>
    %14 = vector.shape_cast %3 : vector<1x16xi1> to vector<1x16xi1>
    %15 = vector.broadcast %14 : vector<1x16xi1> to vector<16x16xi1>
    %16 = arith.select %15, %8, %13 : vector<16x16xi1>, vector<16x16xf32>
    %c0_5 = arith.constant 0 : index
    %c0_6 = arith.constant 0 : index
    %c0_7 = arith.constant 0 : index
    %17 = vector.load %arg4[%c0_5, %c0_6, %c0_7] : memref<1x16x16xf32, #tpu.memory_space<vmem>>, vector<1x16x16xf32>
    %18 = vector.shape_cast %17 : vector<1x16x16xf32> to vector<16x16xf32>
    %19 = vector.shape_cast %16 : vector<16x16xf32> to vector<1x16x16xf32>
    tpu.vector_store %arg4[%c0_5, %c0_6, %c0_7], %19 {strides = array<i32>} : memref<1x16x16xf32, #tpu.memory_space<vmem>>, vector<1x16x16xf32>,
    return
  }
  func.func @transform_0(%arg0: i32, %arg1: i32) -> (i32, i32, i32) {
    %c0_i32 = arith.constant 0 : i32
    %c0_i32_0 = arith.constant 0 : i32
    %c0_i32_1 = arith.constant 0 : i32
    return %arg0, %c0_i32, %c0_i32_0 : i32, i32, i32
  }
  func.func @transform_1(%arg0: i32, %arg1: i32) -> (i32, i32, i32) {
    %c0_i32 = arith.constant 0 : i32
    %c0_i32_0 = arith.constant 0 : i32
    return %arg0, %arg1, %c0_i32 : i32, i32, i32
  }
  func.func @transform_2(%arg0: i32, %arg1: i32) -> (i32, i32, i32) {
    %c0_i32 = arith.constant 0 : i32
    %c0_i32_0 = arith.constant 0 : i32
    return %arg0, %arg1, %c0_i32 : i32, i32, i32
  }
}

</mosaic_0001>

<llo_original>
// kernel: tpu_custom_call.1
$region0: #{tpu_custom_call.1}
  #allocation0 [shape = 'u32[]', space=smem, size = 0x4, offset = 0x4, fixed_abs, tag = 'smem constant byte address 0x4 - core index']
  #allocation1 [shape = 'u32[144,128]{1,0:T(1,128)}', space=vmem, size = 0x12000, scoped, tag = 'internal scratch']
  %s0 = inlined_call_operand.hbm [shape: s32[2,1,16], index: 0, kind: input, shape index: {}]
  %s1 = inlined_call_operand.hbm [shape: f32[2,16,18], index: 1, kind: input, shape index: {}]
  %s2 = inlined_call_operand.hbm [shape: f32[2,16,16], index: 2, kind: output, shape index: {}]
  %s3 = sld [smem:[#allocation0]]
  $region49: #{tpu_custom_call.1} parent=0
    _
  %s5 = ssub.s32 1, %s3
  %s6 = scalar_select 0, %s5, %s3
  $region1: #{tpu_custom_call.1} parent=0
    #allocation2 [shape = 'u8[1024]{0}', space=vmem, size = 0x400, scoped, tag = 'input window, operand 0']
    #allocation3 [shape = 's32[2]{0}', space=sflag, size = 0x8, scoped, tag = 'scoped memory for tpu_custom_call.1']
    #allocation4 [shape = 's32[2]{0}', space=sflag, size = 0x8, scoped, tag = 'scoped memory for tpu_custom_call.1']
    #allocation5 [shape = 'u8[16384]{0}', space=vmem, size = 0x4000, scoped, tag = 'input window, operand 1']
    #allocation6 [shape = 's32[2]{0}', space=sflag, size = 0x8, scoped, tag = 'scoped memory for tpu_custom_call.1']
    #allocation7 [shape = 'u8[16384]{0}', space=vmem, size = 0x4000, scoped, tag = 'output window, operand 0']
    %7 = vsyncpa [#allocation3], 0
    %s8 = scalar_lea.sflag [#allocation3], 1
    %9 = vsyncpa %s8, 0
    %10 = vsyncpa [#allocation6], 0
    %s11 = scalar_lea.sflag [#allocation6], 1
    %12 = vsyncpa %s11, 0
    %13 = vsyncpa [#allocation4], 0
    %s14 = scalar_lea.sflag [#allocation4], 1
    %15 = vsyncpa %s14, 0
    loop: start=0, step=1, limit=4
    $region2: #{tpu_custom_call.1} parent=1 // loop_pre_header
      _
    $region3: #{tpu_custom_call.1} parent=1 // loop_header
      %s17 = sphi 0, %s21
      %p18 = scmp.ge.s32.totalorder %s17, 4
      %s24 = sphi 0, %s36
      %s25 = sphi 0, %s32
      %s26 = sphi 0, %s24
      %s27 = sphi 0, %s25
      %s28 = sphi 0, %s26
      %s29 = sphi 0, %s27
      %s39 = sphi 0, %s41
      %s42 = sphi 0, %s39
      %s43 = sphi 0, %s42
      %s59 = sphi 0, %s43
      %s67 = sphi 0, %s69
      %s70 = sphi 0, %s67
      %s71 = sphi 0, %s70
      %s87 = sphi 0, %s71
      %s95 = sphi 0, %s97
      %s98 = sphi 0, %s95
      %s99 = sphi 0, %s98
      %s115 = sphi 0, %s99
    $region4: #{tpu_custom_call.1} parent=1 // loop_header_branch
      %20 = sbr.rel (%p18) target = $region8
    $region5: #{tpu_custom_call.1} parent=1 // loop_body
      %s22 = ssub.s32 %s17, 1
      %s23 = ssub.s32 %s17, 2
      %s30 = sadd.s32 1, %s25
      %p31 = scmp.ge.s32.totalorder %s30, 1
      %s32 = scalar_select %p31, 0, %s30
      %s33 = sadd.s32 1, %s24
      %s34 = scalar_select %p31, %s33, %s24
      %p35 = scmp.ge.s32.totalorder %s34, 2
      %s36 = scalar_select %p35, 0, %s34
      %s37 = ssub.s32 %s24, %s36
      %p38 = scmp.eq.s32.totalorder %s37, 0
      %s40 = sadd.s32 %s39, 1
      %s41 = scalar_select %p38, %s39, %s40
      %p44 = pneg %p38
      %p45 = scmp.eq.s32.totalorder %s17, 1
      %p46 = por %p44, %p45
      %p47 = scmp.ne.s32.totalorder %s39, %s42
      %p48 = scmp.eq.s32.totalorder %s17, 0
      %p49 = por %p47, %p48
      %p50 = scmp.ne.s32.totalorder %s39, %s42
      %p51 = scmp.eq.s32.totalorder %s22, 1
      %p52 = por %p50, %p51
      %p53 = scmp.ne.s32.totalorder %s42, %s43
      %p54 = scmp.eq.s32.totalorder %s22, 0
      %p55 = por %p53, %p54
      %p56 = scmp.ne.s32.totalorder %s42, %s43
      %p57 = scmp.eq.s32.totalorder %s23, 1
      %p58 = por %p56, %p57
      %p60 = scmp.ne.s32.totalorder %s43, %s59
      %p61 = scmp.eq.s32.totalorder %s23, 0
      %p62 = por %p60, %p61
      %s63 = ssub.s32 %s24, %s36
      %s64 = ssub.s32 %s25, %s32
      %s65 = sor.u32 %s63, %s64
      %p66 = scmp.eq.s32.totalorder %s65, 0
      %s68 = sadd.s32 %s67, 1
      %s69 = scalar_select %p66, %s67, %s68
      %p72 = pneg %p66
      %p73 = scmp.eq.s32.totalorder %s17, 1
      %p74 = por %p72, %p73
      %p75 = scmp.ne.s32.totalorder %s67, %s70
      %p76 = scmp.eq.s32.totalorder %s17, 0
      %p77 = por %p75, %p76
      %p78 = scmp.ne.s32.totalorder %s67, %s70
      %p79 = scmp.eq.s32.totalorder %s22, 1
      %p80 = por %p78, %p79
      %p81 = scmp.ne.s32.totalorder %s70, %s71
      %p82 = scmp.eq.s32.totalorder %s22, 0
      %p83 = por %p81, %p82
      %p84 = scmp.ne.s32.totalorder %s70, %s71
      %p85 = scmp.eq.s32.totalorder %s23, 1
      %p86 = por %p84, %p85
      %p88 = scmp.ne.s32.totalorder %s71, %s87
      %p89 = scmp.eq.s32.totalorder %s23, 0
      %p90 = por %p88, %p89
      %s91 = ssub.s32 %s24, %s36
      %s92 = ssub.s32 %s25, %s32
      %s93 = sor.u32 %s91, %s92
      %p94 = scmp.eq.s32.totalorder %s93, 0
      %s96 = sadd.s32 %s95, 1
      %s97 = scalar_select %p94, %s95, %s96
      %p100 = pneg %p94
      %p101 = scmp.eq.s32.totalorder %s17, 1
      %p102 = por %p100, %p101
      %p103 = scmp.ne.s32.totalorder %s95, %s98
      %p104 = scmp.eq.s32.totalorder %s17, 0
      %p105 = por %p103, %p104
      %p106 = scmp.ne.s32.totalorder %s95, %s98
      %p107 = scmp.eq.s32.totalorder %s22, 1
      %p108 = por %p106, %p107
      %p109 = scmp.ne.s32.totalorder %s98, %s99
      %p110 = scmp.eq.s32.totalorder %s22, 0
      %p111 = por %p109, %p110
      %p112 = scmp.ne.s32.totalorder %s98, %s99
      %p113 = scmp.eq.s32.totalorder %s23, 1
      %p114 = por %p112, %p113
      %p116 = scmp.ne.s32.totalorder %s99, %s115
      %p117 = scmp.eq.s32.totalorder %s23, 0
      %p118 = por %p116, %p117
      %p119 = scmp.le.s32.totalorder 1, %s17
      %p120 = scmp.lt.s32.totalorder %s17, 3
      %p121 = pnand %p119, %p120
      %p122 = pneg %p121
      // Predicated region
      $region9: #{tpu_custom_call.1} parent=5 // pred_check
        _
      $region10: #{tpu_custom_call.1} parent=5 // pred_check_branch
        %124 = sbr.rel (%p121) target = $region12
      $region11: #{tpu_custom_call.1} parent=5 // pred_region
        %s125 = ssub.s32 %s17, 1
      $region12: #{tpu_custom_call.1} parent=5 // pred_fallthru
        _
      %p126 = scmp.lt.s32.totalorder %s17, 2
      // Predicated region
      $region13: #{tpu_custom_call.1} parent=5 // pred_check
        %p127 = pneg %p126
      $region14: #{tpu_custom_call.1} parent=5 // pred_check_branch
        %129 = sbr.rel (%p127) target = $region16
      $region15: #{tpu_custom_call.1} parent=5 // pred_region
        // Predicated region
        $region17: #{tpu_custom_call.1} parent=15 // pred_check
          %p130 = pneg %p49
        $region18: #{tpu_custom_call.1} parent=15 // pred_check_branch
          %132 = sbr.rel (%p130) target = $region20
        $region19: #{tpu_custom_call.1} parent=15 // pred_region
          %s133 = sand.u32 %s39, 1
          %s134 = scalar_lea.sflag [#allocation3], %s133
          %s135 = sand.u32 %s39, 1
          %s136 = scalar_lea.vmem [#allocation2], %s135
          %s138 = ssub.s32 16, 16
          %139 = vsyncadd %s134, %s138
          %s140 = smul.addr %s24, 16
          %s141 = scalar_lea.hbm %s0, %s140
          %s143 = sshll.u32 %s136, 4
          %s144 = int_to_ptr.vmem [resolvable:$true] %s143
          %146 = dma.hbm_to_vmem [thread:$0]  %s141, 16, %s144, %s134
        $region20: #{tpu_custom_call.1} parent=15 // pred_fallthru
          _
        // Predicated region
        $region21: #{tpu_custom_call.1} parent=15 // pred_check
          %p147 = pneg %p77
        $region22: #{tpu_custom_call.1} parent=15 // pred_check_branch
          %149 = sbr.rel (%p147) target = $region24
        $region23: #{tpu_custom_call.1} parent=15 // pred_region
          %s150 = sand.u32 %s67, 1
          %s151 = scalar_lea.sflag [#allocation6], %s150
          %s152 = sand.u32 %s67, 1
          %s153 = smul.addr %s152, 16
          %s154 = scalar_lea.vmem [#allocation5], %s153
          %s155 = smul.u32 2, %s25
          %s157 = ssub.s32 256, 256
          %158 = vsyncadd %s151, %s157
          %s159 = smul.addr %s24, 2
          %s160 = sadd.s32 %s155, %s159
          %s161 = smul.addr %s160, 128
          %s162 = scalar_lea.hbm %s1, %s161
          %s163 = sshll.u32 %s154, 4
          %s164 = int_to_ptr.vmem [resolvable:$true] %s163
          %169 = dma.hbm_to_vmem [thread:$0]  %s162, 256, %s164, %s151, 128, 128, 8
        $region24: #{tpu_custom_call.1} parent=15 // pred_fallthru
          _
      $region16: #{tpu_custom_call.1} parent=5 // pred_fallthru
        _
      %p170 = scmp.le.s32.totalorder 1, %s17
      %p171 = scmp.lt.s32.totalorder %s17, 3
      %p172 = pnand %p170, %p171
      %p173 = pneg %p172
      // Predicated region
      $region25: #{tpu_custom_call.1} parent=5 // pred_check
        _
      $region26: #{tpu_custom_call.1} parent=5 // pred_check_branch
        %175 = sbr.rel (%p172) target = $region28
      $region27: #{tpu_custom_call.1} parent=5 // pred_region
        %s176 = ssub.s32 %s17, 1
        %s177 = sand.u32 %s42, 1
        %s178 = scalar_lea.sflag [#allocation3], %s177
        %s179 = sand.u32 %s42, 1
        %s180 = scalar_lea.vmem [#allocation2], %s179
        // Predicated region
        $region29: #{tpu_custom_call.1} parent=27 // pred_check
          %p181 = pneg %p55
        $region30: #{tpu_custom_call.1} parent=27 // pred_check_branch
          %183 = sbr.rel (%p181) target = $region32
        $region31: #{tpu_custom_call.1} parent=27 // pred_region
          %184 = dma.done %s178, 16
        $region32: #{tpu_custom_call.1} parent=27 // pred_fallthru
          _
        %s185 = sand.u32 %s70, 1
        %s186 = scalar_lea.sflag [#allocation6], %s185
        %s187 = sand.u32 %s70, 1
        %s188 = smul.addr %s187, 16
        %s189 = scalar_lea.vmem [#allocation5], %s188
        // Predicated region
        $region33: #{tpu_custom_call.1} parent=27 // pred_check
          %p190 = pneg %p83
        $region34: #{tpu_custom_call.1} parent=27 // pred_check_branch
          %192 = sbr.rel (%p190) target = $region36
        $region35: #{tpu_custom_call.1} parent=27 // pred_region
          %193 = dma.done %s186, 256
        $region36: #{tpu_custom_call.1} parent=27 // pred_fallthru
          _
        %s194 = sand.u32 %s42, 1
        %s195 = scalar_lea.sflag [#allocation3], %s194
        %s196 = sand.u32 %s42, 1
        %s197 = scalar_lea.vmem [#allocation2], %s196
        %p198 = pneg %p55
        %p199 = pneg %p52
        %s200 = sand.u32 %s70, 1
        %s201 = scalar_lea.sflag [#allocation6], %s200
        %s202 = sand.u32 %s70, 1
        %s203 = smul.addr %s202, 16
        %s204 = scalar_lea.vmem [#allocation5], %s203
        %p205 = pneg %p83
        %p206 = pneg %p80
        %p207 = pneg %p111
        %p208 = pneg %p108
        %s209 = sand.u32 %s98, 1
        %s210 = scalar_lea.sflag [#allocation4], %s209
        %s211 = sand.u32 %s98, 1
        %s212 = smul.addr %s211, 16
        %s213 = scalar_lea.vmem [#allocation7], %s212
        %s214 = smul.u32 2, %s27
        %s215 = smul.u32 2, %s27
        %v216 = vld [vmem:[%s180] sm:$0x1]
        %vm217 = vcmp.eq.s32.totalorder %v216, 0
        %vm218 = vcmp.eq.s32.totalorder %v216, 2
        %v219 = vld [vmem:[%s189] sm:$0xff]
        %v220 = vld [vmem:[%s189 + $0x8] sm:$0xff]
        %v221 = vsel %vm218, 1, 0
        %v222 = vlaneseq
        %v223 = vshrl.u32 %v222, 7
        %v224 = vsub.s32 0, %v223
        %v225 = vrot.slane %v221, %v224
        %vm226 = vcmp.eq.s32.totalorder %v225, 1
        %229 = vrot.lane.b32.xlu0 %v219, 126
        %v230 = vpop.permute.xlu0 %229
        %231 = vrot.lane.b32.xlu0 %v220, 126
        %v232 = vpop.permute.xlu0 %231
        %235 = vrot.lane.b32.xlu0 %v219, 127
        %v236 = vpop.permute.xlu0 %235
        %237 = vrot.lane.b32.xlu0 %v220, 127
        %v238 = vpop.permute.xlu0 %237
        %v241 = vsel %vm226, %v230, %v236
        %v242 = vsel %vm226, %v232, %v238
        %v243 = vsel %vm217, 1, 0
        %v244 = vlaneseq
        %v245 = vshrl.u32 %v244, 7
        %v246 = vsub.s32 0, %v245
        %v247 = vrot.slane %v243, %v246
        %vm248 = vcmp.eq.s32.totalorder %v247, 1
        %v249 = vsel %vm248, %v219, %v241
        %v250 = vsel %vm248, %v220, %v242
        %vm251 = vcmask 130048
        %252 = vst.msk [vmem:[%s213] sm:$0xff] %vm251, %v249
        %253 = vst.msk [vmem:[%s213 + $0x8] sm:$0xff] %vm251, %v250
        %s254 = sand.u32 %s98, 1
        %s255 = scalar_lea.sflag [#allocation4], %s254
        %s256 = sand.u32 %s98, 1
        %s257 = smul.addr %s256, 16
        %s258 = scalar_lea.vmem [#allocation7], %s257
        // Predicated region
        $region37: #{tpu_custom_call.1} parent=27 // pred_check
          %p259 = pneg %p108
        $region38: #{tpu_custom_call.1} parent=27 // pred_check_branch
          %261 = sbr.rel (%p259) target = $region40
        $region39: #{tpu_custom_call.1} parent=27 // pred_region
          %s262 = smul.u32 2, %s27
          %s264 = ssub.s32 256, 256
          %265 = vsyncadd %s255, %s264
          %s266 = smul.addr %s26, 2
          %s267 = sadd.s32 %s262, %s266
          %s268 = smul.addr %s267, 128
          %s269 = scalar_lea.hbm %s2, %s268
          %s270 = sshll.u32 %s258, 4
          %s271 = int_to_ptr.vmem [resolvable:$true] %s270
          %276 = dma.vmem_to_hbm [thread:$0]  %s271, 256, %s269, %s255, 128, 128, 8
        $region40: #{tpu_custom_call.1} parent=27 // pred_fallthru
          _
      $region28: #{tpu_custom_call.1} parent=5 // pred_fallthru
        _
      %p277 = scmp.le.s32.totalorder 2, %s17
      // Predicated region
      $region41: #{tpu_custom_call.1} parent=5 // pred_check
        %p278 = pneg %p277
      $region42: #{tpu_custom_call.1} parent=5 // pred_check_branch
        %280 = sbr.rel (%p278) target = $region44
      $region43: #{tpu_custom_call.1} parent=5 // pred_region
        %s281 = ssub.s32 %s17, 2
        // Predicated region
        $region45: #{tpu_custom_call.1} parent=43 // pred_check
          %p282 = pneg %p114
        $region46: #{tpu_custom_call.1} parent=43 // pred_check_branch
          %284 = sbr.rel (%p282) target = $region48
        $region47: #{tpu_custom_call.1} parent=43 // pred_region
          %s285 = sand.u32 %s99, 1
          %s286 = scalar_lea.sflag [#allocation4], %s285
          %s287 = sand.u32 %s99, 1
          %s288 = smul.addr %s287, 16
          %s289 = scalar_lea.vmem [#allocation7], %s288
          %290 = dma.done %s286, 256
        $region48: #{tpu_custom_call.1} parent=43 // pred_fallthru
          _
      $region44: #{tpu_custom_call.1} parent=5 // pred_fallthru
        _
    $region6: #{tpu_custom_call.1} parent=1 // loop_footer
      %s21 = sadd.s32 1, %s17
    $region7: #{tpu_custom_call.1} parent=1 // loop_footer_branch
      %16 = sbr.rel target = $region3
    $region8: #{tpu_custom_call.1} parent=1 // loop_exit
      _
    %291 = vsyncpa [#allocation3], 1
    %s292 = scalar_lea.sflag [#allocation3], 1
    %293 = vsyncpa %s292, 1
    %294 = vsyncpa [#allocation6], 1
    %s295 = scalar_lea.sflag [#allocation6], 1
    %296 = vsyncpa %s295, 1
    %297 = vsyncpa [#allocation4], 1
    %s298 = scalar_lea.sflag [#allocation4], 1
    %299 = vsyncpa %s298, 1

</llo_original>
